<compile_context>
chip_gen: v7x
topology: tpu7x:2x2x1
jax: 0.10.0
libtpu: 0.0.40
codegen_flags: <defaults>
</compile_context>

<pallas_src>
import functools

import jax
import jax.numpy as jnp
from jax.experimental import pallas as pl
from jax.experimental.pallas import tpu as pltpu

TEMPERATURE = 2.0 / 3.0
ZETA = 1.1
GAMMA = -0.1
_INV_TEMP = 1.0 / TEMPERATURE
_SCALE = ZETA - GAMMA

# murmur3 / golden-ratio constants as int32 (two's-complement) Python ints.
_M1 = -2048144789          # 0x85EBCA6B
_M2 = -1028477387          # 0xC2B2AE35
_GOLD = -1640531527        # 0x9E3779B9


# ----------------------------- tiling helpers ------------------------------ #

def _round_up(n, m):
    return ((n + m - 1) // m) * m


def _pick_tile(dim, align, cap):
    """Largest tile <= cap (multiple of `align`) that avoids extra padding."""
    padded = _round_up(max(dim, 1), align)
    if padded <= cap:
        return padded
    for mult in range(cap // align, 0, -1):
        t = mult * align
        if padded % t == 0:
            return t
    return align


def _train_compute_dtype():
    # bf16 gate math on bf16-capable VPU/EUP (v6e/v7x); f32 on v5e.
    try:
        kind = jax.devices()[0].device_kind.lower()
    except Exception:  # pragma: no cover
        return jnp.float32
    if "v5e" in kind or "v5 lite" in kind or "v5lite" in kind:
        return jnp.float32
    return jnp.bfloat16


def _pad2(a, rows, cols):
    return jnp.pad(a, ((0, rows - a.shape[0]), (0, cols - a.shape[1])))


# ------------------------------ hash PRNG ---------------------------------- #

def _fmix32(h):
    """murmur3 32-bit finalizer on int32 (wrapping mul, logical shifts)."""
    h = h ^ ((h >> 16) & 0xFFFF)
    h = h * _M1
    h = h ^ ((h >> 13) & 0x7FFFF)
    h = h * _M2
    h = h ^ ((h >> 16) & 0xFFFF)
    return h


# ------------------------------- kernels ----------------------------------- #

def _eval_kernel(x_ref, wt_ref, b_ref, o_ref):
    """out[b,o] = sum_i x[b,i] * masked_w_t[i,o] + bias[o].

    masked_w_t is the pre-masked, pre-transposed bf16 weight built in the
    wrapper (gate sign taken from f32 log_alpha).  Output block is resident
    across the reduction axis; bias is used as the initializer.
    """
    @pl.when(pl.program_id(2) == 0)
    def _init():
        o_ref[...] = jnp.broadcast_to(b_ref[...], o_ref.shape)

    o_ref[...] += jnp.dot(x_ref[...].astype(jnp.bfloat16), wt_ref[...],
                          preferred_element_type=jnp.float32)


def _make_train_kernel(tb, use_prng, compute_dtype):
    """out[b,o] = sum_i x[b,i] * w[o,i] * z[b,o,i] + bias[o], hard-concrete z."""

    def kernel(*refs):
        if use_prng:
            seed_ref, x_ref, w_ref, la_ref, b_ref, o_ref, acc_ref = refs
        else:
            x_ref, w_ref, la_ref, u_ref, b_ref, o_ref, acc_ref = refs

        i_idx = pl.program_id(2)
        n_i = pl.num_programs(2)

        @pl.when(i_idx == 0)
        def _init():
            acc_ref[...] = jnp.zeros_like(acc_ref)

        w = w_ref[...].astype(compute_dtype)                       # (to, ti)
        # Hoisted per-row-invariant scaling (review): log_alpha / T once/tile.
        la_t = (la_ref[...] * _INV_TEMP).astype(compute_dtype)     # (to, ti)
        x_tile = x_ref[...].astype(compute_dtype)                  # (tb, ti)
        to, ti = w.shape

        if use_prng:
            cell = (pl.program_id(0) * pl.num_programs(1)
                    + pl.program_id(1)) * n_i + i_idx
            base = _fmix32(_fmix32(seed_ref[0]) ^ (cell * _GOLD))
            rows_iota = jax.lax.broadcasted_iota(jnp.int32, (to, ti), 0)
            cols_iota = jax.lax.broadcasted_iota(jnp.int32, (to, ti), 1)
            elem_id = rows_iota * ti + cols_iota

        row_outputs = []
        for beta in range(tb):                    # static unrolled per-row loop
            x_row = x_tile[beta:beta + 1, :]                       # (1, ti)
            if use_prng:
                row_h = _fmix32(base ^ ((beta + 1) * 40503))
                h = _fmix32(elem_id * _GOLD + row_h)
                # 24 random mantissa bits -> u strictly inside (0, 1).
                u = ((h & 0x00FFFFFF).astype(jnp.float32) + 0.5) * (1.0 / 16777216.0)
                u = u.astype(compute_dtype)
            else:
                u = u_ref[beta].astype(compute_dtype)              # (to, ti)
            # hard-concrete gate; logit(u) with a single log.
            s = jax.nn.sigmoid(jnp.log(u / (1.0 - u)) * _INV_TEMP + la_t)
            z = jnp.clip(s * _SCALE + GAMMA, 0.0, 1.0)
            prod = (w * z) * x_row                                 # (to, ti) VPU
            # Per-step lane (XLU) reduce into the small (tb, to) accumulator.
            row_outputs.append(
                jnp.sum(prod, axis=-1, dtype=jnp.float32).reshape(1, -1))
        acc_ref[...] += jnp.concatenate(row_outputs, axis=0)       # (tb, to)

        @pl.when(i_idx == n_i - 1)
        def _finalize():
            o_ref[...] = acc_ref[...] + b_ref[...]

    return kernel


# -------------------------------- wrapper ----------------------------------- #

@functools.partial(jax.jit, static_argnames=("training",))
def l0_linear_forward(x, weight, bias, log_alpha, u=None, seed=0, *, training=False):
    """Forward pass of L0RegularizedLinear.

    x:         (B, in_features) f32
    weight:    (out_features, in_features) f32
    bias:      (out_features,) f32
    log_alpha: (out_features, in_features) f32
    u:         optional (B, out_features, in_features) uniform noise (train).
               If None in training mode, noise comes from an in-kernel
               counter-hash PRNG seeded by `seed` (no (B,O,I) HBM stream).
    """
    b_sz, in_f = x.shape
    out_f = weight.shape[0]

    compiler_params = pltpu.CompilerParams(
        dimension_semantics=("parallel", "parallel", "arbitrary"),
        vmem_limit_bytes=32 * 1024 * 1024)

    if not training:
        # ---------------- eval ----------------
        tb = _pick_tile(b_sz, 8, 256)
        to = _pick_tile(out_f, 128, 512)
        ti = _pick_tile(in_f, 128, 1024)
        bp = _round_up(b_sz, tb)
        op = _round_up(out_f, to)
        ip = _round_up(in_f, ti)
        # Megacore: keep at least one "parallel" grid axis >= 2 when possible.
        if bp // tb == 1 and op // to == 1 and to >= 256 and (to // 2) % 128 == 0:
            to //= 2
        grid = (bp // tb, op // to, ip // ti)

        # Gate + bf16 cast + transpose hoisted to the wrapper: sign-safe mask
        # from f32 log_alpha, bf16 stream (4x less HBM than f32 w + f32 la),
        # (in, out)-major so the MXU sees natural [M,K]x[K,N] (no transpose).
        mw_t = jnp.where(log_alpha > 0.0, weight, 0.0).astype(jnp.bfloat16).T
        xp = _pad2(x, bp, ip)
        wtp = _pad2(mw_t, ip, op)
        biasp = jnp.pad(bias, (0, op - out_f)).reshape(1, op)

        x_spec = pl.BlockSpec((tb, ti), lambda b, o, i, *_: (b, i))
        wt_spec = pl.BlockSpec((ti, to), lambda b, o, i, *_: (i, o))
        bias_spec = pl.BlockSpec((1, to), lambda b, o, i, *_: (0, o))
        out_spec = pl.BlockSpec((tb, to), lambda b, o, i, *_: (b, o))

        n_bt, n_ot, _ = grid
        cost = pl.CostEstimate(
            flops=2 * bp * op * ip,
            transcendentals=0,
            bytes_accessed=int(4 * bp * ip * n_ot + 2 * ip * op * n_bt
                               + 4 * bp * op + 4 * op))
        out = pl.pallas_call(
            _eval_kernel,
            out_shape=jax.ShapeDtypeStruct((bp, op), jnp.float32),
            grid=grid,
            in_specs=[x_spec, wt_spec, bias_spec],
            out_specs=out_spec,
            compiler_params=compiler_params,
            cost_estimate=cost,
        )(xp, wtp, biasp)
        return out[:b_sz, :out_f]

    # ---------------- training ----------------
    use_prng = u is None
    # f32 on the external-noise (verification) path and on v5e; bf16 elsewhere.
    compute_dtype = _train_compute_dtype() if use_prng else jnp.float32

    tb = 8
    to = _pick_tile(out_f, 128, 256)
    ti = _pick_tile(in_f, 128, 512)
    bp = _round_up(b_sz, tb)
    op = _round_up(out_f, to)
    ip = _round_up(in_f, ti)
    grid = (bp // tb, op // to, ip // ti)

    xp = _pad2(x, bp, ip)
    wp = _pad2(weight, op, ip)
    lap = _pad2(log_alpha, op, ip)
    biasp = jnp.pad(bias, (0, op - out_f)).reshape(1, op)

    x_spec = pl.BlockSpec((tb, ti), lambda b, o, i, *_: (b, i))
    w_spec = pl.BlockSpec((to, ti), lambda b, o, i, *_: (o, i))   # ignores b
    bias_spec = pl.BlockSpec((1, to), lambda b, o, i, *_: (0, o))
    out_spec = pl.BlockSpec((tb, to), lambda b, o, i, *_: (b, o))

    n_bt, n_ot, _ = grid
    kernel = _make_train_kernel(tb, use_prng, compute_dtype)
    cost = pl.CostEstimate(
        flops=12 * bp * op * ip,
        transcendentals=2 * bp * op * ip,
        bytes_accessed=int(4 * bp * ip * n_ot + 8 * ip * op * n_bt + 4 * bp * op
                           + 4 * op + (0 if use_prng else 4 * bp * op * ip)))

    if use_prng:
        # TODO(synk): torch.rand's exact bitstream has no TPU equivalent; this
        # path samples U(0,1) from an in-kernel counter-hash PRNG instead.
        seed_arr = jnp.reshape(jnp.asarray(seed, dtype=jnp.int32), (1,))
        grid_spec = pltpu.PrefetchScalarGridSpec(
            num_scalar_prefetch=1, grid=grid,
            in_specs=[x_spec, w_spec, w_spec, bias_spec],
            out_specs=out_spec,
            scratch_shapes=[pltpu.VMEM((tb, to), jnp.float32)])
        out = pl.pallas_call(
            kernel,
            out_shape=jax.ShapeDtypeStruct((bp, op), jnp.float32),
            grid_spec=grid_spec,
            compiler_params=compiler_params,
            cost_estimate=cost,
        )(seed_arr, xp, wp, lap, biasp)
    else:
        # Externally supplied noise (verification path); pad with 0.5 (in (0,1)).
        up = jnp.pad(u, ((0, bp - b_sz), (0, op - out_f), (0, ip - in_f)),
                     constant_values=0.5)
        u_spec = pl.BlockSpec((tb, to, ti), lambda b, o, i, *_: (b, o, i))
        out = pl.pallas_call(
            kernel,
            out_shape=jax.ShapeDtypeStruct((bp, op), jnp.float32),
            grid=grid,
            in_specs=[x_spec, w_spec, w_spec, u_spec, bias_spec],
            out_specs=out_spec,
            scratch_shapes=[pltpu.VMEM((tb, to), jnp.float32)],
            compiler_params=compiler_params,
            cost_estimate=cost,
        )(xp, wp, lap, up, biasp)
    return out[:b_sz, :out_f]


# ------------------------------- references --------------------------------- #

def _reference_eval(x, weight, bias, log_alpha, *, bf16=True):
    z = (log_alpha > 0.0).astype(weight.dtype)        # == sigmoid(la) > 0.5
    mw = weight * z
    if bf16:
        out = jax.lax.dot_general(
            x.astype(jnp.bfloat16), mw.astype(jnp.bfloat16),
            dimension_numbers=(((1,), (1,)), ((), ())),
            preferred_element_type=jnp.float32)
    else:
        out = x @ mw.T
    return out + bias[None, :]


def _reference_train(x, weight, bias, log_alpha, u):
    s = jax.nn.sigmoid(
        (jnp.log(u) - jnp.log(1.0 - u) + log_alpha[None]) / TEMPERATURE)
    s = s * (ZETA - GAMMA) + GAMMA
    z = jnp.clip(s, 0.0, 1.0)
    out = jnp.einsum("bi,boi->bo", x, weight[None] * z)
    return out + bias[None, :]


# --------------------------------- main -------------------------------------- #

if __name__ == "__main__":
    key = jax.random.PRNGKey(0)
    k_x, k_w, k_la, k_u = jax.random.split(key, 4)

    # Small, deliberately unaligned shapes to exercise the padding/tiling path.
    batch = 6
    in_features = 160
    out_features = 80

    # Deterministic init mirroring reset_parameters():
    #   weight: kaiming_uniform_, bias: zeros, log_alpha: Normal(0, 0.01).
    bound = (6.0 / in_features) ** 0.5
    weight = jax.random.uniform(
        k_w, (out_features, in_features), jnp.float32, minval=-bound, maxval=bound)
    bias = jnp.zeros((out_features,), jnp.float32)
    log_alpha = 0.01 * jax.random.normal(
        k_la, (out_features, in_features), jnp.float32)
    x = jax.random.normal(k_x, (batch, in_features), jnp.float32)

    # --- eval mode: deterministic hard gates, premasked bf16 MXU matmul ---
    out_eval = jax.block_until_ready(
        l0_linear_forward(x, weight, bias, log_alpha, training=False))
    assert out_eval.shape == (batch, out_features)
    ref_eval_bf16 = _reference_eval(x, weight, bias, log_alpha, bf16=True)
    ref_eval_f32 = _reference_eval(x, weight, bias, log_alpha, bf16=False)
    assert jnp.allclose(out_eval, ref_eval_bf16, atol=2e-3, rtol=2e-3)
    assert jnp.allclose(out_eval, ref_eval_f32, atol=5e-2, rtol=5e-2)

    # --- training mode with externally supplied noise: exact (f32) check of
    #     the hard-concrete math + tiled, per-step-lane-reduce accumulation ---
    u = jax.random.uniform(
        k_u, (batch, out_features, in_features), jnp.float32,
        minval=1e-6, maxval=1.0 - 1e-6)
    out_train = jax.block_until_ready(
        l0_linear_forward(x, weight, bias, log_alpha, u=u, training=True))
    ref_train = _reference_train(x, weight, bias, log_alpha, u)
    assert jnp.allclose(out_train, ref_train, atol=1e-3, rtol=1e-3)

    # --- training mode with in-kernel hashed-counter noise (no HBM stream) ---
    out_prng1 = jax.block_until_ready(
        l0_linear_forward(x, weight, bias, log_alpha, seed=1234, training=True))
    out_prng2 = jax.block_until_ready(
        l0_linear_forward(x, weight, bias, log_alpha, seed=1234, training=True))
    assert out_prng1.shape == (batch, out_features)
    assert bool(jnp.all(jnp.isfinite(out_prng1)))
    assert bool(jnp.array_equal(out_prng1, out_prng2))   # deterministic per seed
    # gates lie in [0, 1]  =>  |out - bias| <= |x| @ |w|.T (+ bf16 slack)
    envelope = jnp.abs(x) @ jnp.abs(weight).T * 1.01 + 1e-2
    assert bool(jnp.all(jnp.abs(out_prng1 - bias[None, :]) <= envelope))

    print("KERNEL_OK")
</pallas_src>

<mosaic_0001>
module attributes {stable_mosaic.version = 11 : i64} {
  func.func @_eval_kernel(%arg0: i32, %arg1: i32, %arg2: i32, %arg3: memref<8x256xf32, #tpu.memory_space<vmem>>, %arg4: memref<256x128xbf16, #tpu.memory_space<vmem>>, %arg5: memref<1x128xf32, #tpu.memory_space<vmem>>, %arg6: memref<8x128xf32, #tpu.memory_space<vmem>>) attributes {dimension_semantics = [#tpu.dimension_semantics<parallel>, #tpu.dimension_semantics<parallel>, #tpu.dimension_semantics<arbitrary>], iteration_bounds = array<i64: 1, 1, 1>, scalar_prefetch = 0 : i64, scratch_operands = 0 : i64, tpu.core_type = #tpu.core_type<tc>, window_params = [{transform_indices = @transform_0, window_bounds = array<i64: 8, 256>}, {transform_indices = @transform_1, window_bounds = array<i64: 256, 128>}, {transform_indices = @transform_2, window_bounds = array<i64: 1, 128>}, {transform_indices = @transform_3, window_bounds = array<i64: 8, 128>}]} {
    %c0_i32 = arith.constant 0 : i32
    %0 = arith.cmpi eq, %arg2, %c0_i32 : i32
    %1 = arith.extui %0 : i1 to i32
    %c0_i32_0 = arith.constant 0 : i32
    %2 = arith.cmpi ne, %1, %c0_i32_0 : i32
    scf.if %2 {
      %c0_8 = arith.constant 0 : index
      %c0_9 = arith.constant 0 : index
      %10 = vector.load %arg5[%c0_8, %c0_9] : memref<1x128xf32, #tpu.memory_space<vmem>>, vector<1x128xf32>
      %11 = vector.shape_cast %10 : vector<1x128xf32> to vector<1x128xf32>
      %12 = vector.broadcast %11 : vector<1x128xf32> to vector<8x128xf32>
      %c0_10 = arith.constant 0 : index
      %c0_11 = arith.constant 0 : index
      %13 = vector.load %arg6[%c0_10, %c0_11] : memref<8x128xf32, #tpu.memory_space<vmem>>, vector<8x128xf32>
      tpu.vector_store %arg6[%c0_10, %c0_11], %12 {strides = array<i32>} : memref<8x128xf32, #tpu.memory_space<vmem>>, vector<8x128xf32>,
    } else {
    }
    %c0 = arith.constant 0 : index
    %c0_1 = arith.constant 0 : index
    %3 = vector.load %arg6[%c0, %c0_1] : memref<8x128xf32, #tpu.memory_space<vmem>>, vector<8x128xf32>
    %c0_2 = arith.constant 0 : index
    %c0_3 = arith.constant 0 : index
    %4 = vector.load %arg3[%c0_2, %c0_3] : memref<8x256xf32, #tpu.memory_space<vmem>>, vector<8x256xf32>
    %5 = arith.truncf %4 : vector<8x256xf32> to vector<8x256xbf16>
    %c0_4 = arith.constant 0 : index
    %c0_5 = arith.constant 0 : index
    %6 = vector.load %arg4[%c0_4, %c0_5] : memref<256x128xbf16, #tpu.memory_space<vmem>>, vector<256x128xbf16>
    %cst = arith.constant dense<0.000000e+00> : vector<8x128xf32>
    %7 = tpu.matmul %5, %6, %cst {dimension_numbers = #tpu.dot_dimension_numbers<[1], [0], [0], [1], [0, 0, 1, 1], [], []>} : vector<8x256xbf16>, vector<256x128xbf16>, vector<8x128xf32> -> vector<8x128xf32>
    %8 = arith.addf %3, %7 : vector<8x128xf32>
    %c0_6 = arith.constant 0 : index
    %c0_7 = arith.constant 0 : index
    %9 = vector.load %arg6[%c0_6, %c0_7] : memref<8x128xf32, #tpu.memory_space<vmem>>, vector<8x128xf32>
    tpu.vector_store %arg6[%c0_6, %c0_7], %8 {strides = array<i32>} : memref<8x128xf32, #tpu.memory_space<vmem>>, vector<8x128xf32>,
    return
  }
  func.func @transform_0(%arg0: i32, %arg1: i32, %arg2: i32) -> (i32, i32) {
    %c0_i32 = arith.constant 0 : i32
    return %arg0, %arg2 : i32, i32
  }
  func.func @transform_1(%arg0: i32, %arg1: i32, %arg2: i32) -> (i32, i32) {
    %c0_i32 = arith.constant 0 : i32
    return %arg2, %arg1 : i32, i32
  }
  func.func @transform_2(%arg0: i32, %arg1: i32, %arg2: i32) -> (i32, i32) {
    %c0_i32 = arith.constant 0 : i32
    %c0_i32_0 = arith.constant 0 : i32
    return %c0_i32, %arg1 : i32, i32
  }
  func.func @transform_3(%arg0: i32, %arg1: i32, %arg2: i32) -> (i32, i32) {
    %c0_i32 = arith.constant 0 : i32
    return %arg0, %arg1 : i32, i32
  }
}

</mosaic_0001>

<llo_original>
// kernel: l0_linear_forward.1
$region0: #{l0_linear_forward.1}
  #allocation0 [shape = 'u32[]', space=smem, size = 0x4, offset = 0x4, fixed_abs, tag = 'smem constant byte address 0x4 - core index']
  #allocation1 [shape = 'u32[144,128]{1,0:T(1,128)}', space=vmem, size = 0x12000, scoped, tag = 'internal scratch']
  %s0 = inlined_call_operand.vmem [shape: f32[8,256], index: 0, kind: input, shape index: {}]
  %s1 = inlined_call_operand.vmem [shape: bf16[256,128], index: 1, kind: input, shape index: {}]
  %s2 = inlined_call_operand.vmem [shape: f32[1,128], index: 2, kind: input, shape index: {}]
  %s3 = inlined_call_operand.hbm [shape: f32[8,128], index: 3, kind: output, shape index: {}]
  %s4 = sld [smem:[#allocation0]]
  $region26: #{l0_linear_forward.1} parent=0
    _
  %s6 = ssub.s32 1, %s4
  %s7 = scalar_select 0, %s6, %s4
  $region1: #{l0_linear_forward.1} parent=0
    #allocation2 [shape = 'u8[4096]{0}', space=vmem, size = 0x1000, scoped, tag = 'output window, operand 0, single buffered']
    #allocation3 [shape = 's32[1]{0}', space=sflag, size = 0x4, scoped, tag = 'scoped memory for l0_linear_forward.1']
    %8 = vsyncpa [#allocation3], 0
    // Predicated region
    $region2: #{l0_linear_forward.1} parent=1 // pred_check
      _
    $region3: #{l0_linear_forward.1} parent=1 // pred_check_branch
      %10 = sbr.rel (0) target = $region5
    $region4: #{l0_linear_forward.1} parent=1 // pred_region
      _
    $region5: #{l0_linear_forward.1} parent=1 // pred_fallthru
      _
    // Predicated region
    $region6: #{l0_linear_forward.1} parent=1 // pred_check
      _
    $region7: #{l0_linear_forward.1} parent=1 // pred_check_branch
      %12 = sbr.rel (0) target = $region9
    $region8: #{l0_linear_forward.1} parent=1 // pred_region
      _
    $region9: #{l0_linear_forward.1} parent=1 // pred_fallthru
      _
    // Predicated region
    $region10: #{l0_linear_forward.1} parent=1 // pred_check
      _
    $region11: #{l0_linear_forward.1} parent=1 // pred_check_branch
      %14 = sbr.rel (0) target = $region13
    $region12: #{l0_linear_forward.1} parent=1 // pred_region
      _
    $region13: #{l0_linear_forward.1} parent=1 // pred_fallthru
      _
    %p16 = scmp.eq.s32.totalorder 0, 0
    // Predicated region
    $region14: #{l0_linear_forward.1} parent=1 // pred_check
      %p17 = pneg %p16
    $region15: #{l0_linear_forward.1} parent=1 // pred_check_branch
      %19 = sbr.rel (%p17) target = $region17
    $region16: #{l0_linear_forward.1} parent=1 // pred_region
      %v20 = vld [vmem:[%s2] sm:$0x1]
      %v22 = vlaneseq
      %v23 = vshrl.u32 %v22, 7
      %v24 = vsub.s32 0, %v23
      %v25 = vrot.slane %v20, %v24
      %27 = vst [vmem:[#allocation2] sm:$0xff] %v25
    $region17: #{l0_linear_forward.1} parent=1 // pred_fallthru
      _
    %v28 = vld [vmem:[#allocation2] sm:$0xff]
    %v29 = vld [vmem:[%s0] sm:$0xff]
    %v30 = vld [vmem:[%s0 + $0x8] sm:$0xff]
    %v31 = vpack.c.bf16 %v29, %v29
    %v32 = vpack.c.bf16 %v30, %v30
    %v33 = vld [vmem:[%s1] sm:$0xf]
    %v34 = vld [vmem:[%s1 + $0x4] sm:$0xf]
    %v35 = vld [vmem:[%s1 + $0x8] sm:$0xf]
    %v36 = vld [vmem:[%s1 + $0xc] sm:$0xf]
    %v37 = vld [vmem:[%s1 + $0x10] sm:$0xf]
    %v38 = vld [vmem:[%s1 + $0x14] sm:$0xf]
    %v39 = vld [vmem:[%s1 + $0x18] sm:$0xf]
    %v40 = vld [vmem:[%s1 + $0x1c] sm:$0xf]
    %v41 = vld [vmem:[%s1 + $0x20] sm:$0xf]
    %v42 = vld [vmem:[%s1 + $0x24] sm:$0xf]
    %v43 = vld [vmem:[%s1 + $0x28] sm:$0xf]
    %v44 = vld [vmem:[%s1 + $0x2c] sm:$0xf]
    %v45 = vld [vmem:[%s1 + $0x30] sm:$0xf]
    %v46 = vld [vmem:[%s1 + $0x34] sm:$0xf]
    %v47 = vld [vmem:[%s1 + $0x38] sm:$0xf]
    %v48 = vld [vmem:[%s1 + $0x3c] sm:$0xf]
    %v49 = vld [vmem:[%s1 + $0x40] sm:$0xf]
    %v50 = vld [vmem:[%s1 + $0x44] sm:$0xf]
    %v51 = vld [vmem:[%s1 + $0x48] sm:$0xf]
    %v52 = vld [vmem:[%s1 + $0x4c] sm:$0xf]
    %v53 = vld [vmem:[%s1 + $0x50] sm:$0xf]
    %v54 = vld [vmem:[%s1 + $0x54] sm:$0xf]
    %v55 = vld [vmem:[%s1 + $0x58] sm:$0xf]
    %v56 = vld [vmem:[%s1 + $0x5c] sm:$0xf]
    %v57 = vld [vmem:[%s1 + $0x60] sm:$0xf]
    %v58 = vld [vmem:[%s1 + $0x64] sm:$0xf]
    %v59 = vld [vmem:[%s1 + $0x68] sm:$0xf]
    %v60 = vld [vmem:[%s1 + $0x6c] sm:$0xf]
    %v61 = vld [vmem:[%s1 + $0x70] sm:$0xf]
    %v62 = vld [vmem:[%s1 + $0x74] sm:$0xf]
    %v63 = vld [vmem:[%s1 + $0x78] sm:$0xf]
    %v64 = vld [vmem:[%s1 + $0x7c] sm:$0xf]
    %v97 = vunpack.c.l.b16 %v33
    %v98 = vunpack.c.l.b16 %v34
    %v99 = vunpack.c.l.b16 %v35
    %v100 = vunpack.c.l.b16 %v36
    %v101 = vunpack.c.l.b16 %v37
    %v102 = vunpack.c.l.b16 %v38
    %v103 = vunpack.c.l.b16 %v39
    %v104 = vunpack.c.l.b16 %v40
    %v105 = vunpack.c.l.b16 %v41
    %v106 = vunpack.c.l.b16 %v42
    %v107 = vunpack.c.l.b16 %v43
    %v108 = vunpack.c.l.b16 %v44
    %v109 = vunpack.c.l.b16 %v45
    %v110 = vunpack.c.l.b16 %v46
    %v111 = vunpack.c.l.b16 %v47
    %v112 = vunpack.c.l.b16 %v48
    %v113 = vunpack.c.l.b16 %v49
    %v114 = vunpack.c.l.b16 %v50
    %v115 = vunpack.c.l.b16 %v51
    %v116 = vunpack.c.l.b16 %v52
    %v117 = vunpack.c.l.b16 %v53
    %v118 = vunpack.c.l.b16 %v54
    %v119 = vunpack.c.l.b16 %v55
    %v120 = vunpack.c.l.b16 %v56
    %v121 = vunpack.c.l.b16 %v57
    %v122 = vunpack.c.l.b16 %v58
    %v123 = vunpack.c.l.b16 %v59
    %v124 = vunpack.c.l.b16 %v60
    %v125 = vunpack.c.l.b16 %v61
    %v126 = vunpack.c.l.b16 %v62
    %v127 = vunpack.c.l.b16 %v63
    %v128 = vunpack.c.l.b16 %v64
    %v129 = vpack.c.b16 %v98, %v97
    %v130 = vpack.c.b16 %v100, %v99
    %v131 = vpack.c.b16 %v102, %v101
    %v132 = vpack.c.b16 %v104, %v103
    %v133 = vpack.c.b16 %v106, %v105
    %v134 = vpack.c.b16 %v108, %v107
    %v135 = vpack.c.b16 %v110, %v109
    %v136 = vpack.c.b16 %v112, %v111
    %v137 = vpack.c.b16 %v114, %v113
    %v138 = vpack.c.b16 %v116, %v115
    %v139 = vpack.c.b16 %v118, %v117
    %v140 = vpack.c.b16 %v120, %v119
    %v141 = vpack.c.b16 %v122, %v121
    %v142 = vpack.c.b16 %v124, %v123
    %v143 = vpack.c.b16 %v126, %v125
    %v144 = vpack.c.b16 %v128, %v127
    %161 = vmatprep.subr.bf16.mxu0 0
    %162 = vmatpush1.bf16.msra.mxu0 %v129
    %163 = vmatprep.subr.bf16.mxu0 0
    %164 = vmatpush1.bf16.msra.mxu0 %v130
    %165 = vmatprep.subr.bf16.mxu0 0
    %166 = vmatpush1.bf16.msra.mxu0 %v131
    %167 = vmatprep.subr.bf16.mxu0 0
    %168 = vmatpush1.bf16.msra.mxu0 %v132
    %169 = vmatprep.subr.bf16.mxu0 0
    %170 = vmatpush1.bf16.msra.mxu0 %v133
    %171 = vmatprep.subr.bf16.mxu0 0
    %172 = vmatpush1.bf16.msra.mxu0 %v134
    %173 = vmatprep.subr.bf16.mxu0 0
    %174 = vmatpush1.bf16.msra.mxu0 %v135
    %175 = vmatprep.subr.bf16.mxu0 0
    %176 = vmatpush1.bf16.msra.mxu0 %v136
    %177 = vmatprep.subr.bf16.mxu0 0
    %178 = vmatpush1.bf16.msra.mxu0 %v137
    %179 = vmatprep.subr.bf16.mxu0 0
    %180 = vmatpush1.bf16.msra.mxu0 %v138
    %181 = vmatprep.subr.bf16.mxu0 0
    %182 = vmatpush1.bf16.msra.mxu0 %v139
    %183 = vmatprep.subr.bf16.mxu0 0
    %184 = vmatpush1.bf16.msra.mxu0 %v140
    %185 = vmatprep.subr.bf16.mxu0 0
    %186 = vmatpush1.bf16.msra.mxu0 %v141
    %187 = vmatprep.subr.bf16.mxu0 0
    %188 = vmatpush1.bf16.msra.mxu0 %v142
    %189 = vmatprep.subr.bf16.mxu0 0
    %190 = vmatpush1.bf16.msra.mxu0 %v143
    %191 = vmatprep.subr.bf16.mxu0 0
    %192 = vmatpush1.bf16.msra.mxu0 %v144
    %193 = vmatprep.mubr.bf16.mxu0 %v32
    %194 = vmatmul.mubr.bf16.gmra.mrb[0].mxu0 %v31
    %v195 = vpop.f32.mrb[0].mxu0
    %v196 = vadd.f32 0.0, %v195
    %v197 = vpop.f32.mrb[0].mxu0
    %v198 = vpop.f32.mrb[0].mxu0
    %v199 = vpop.f32.mrb[0].mxu0
    %200 = vdwg.mxu0
    %v201 = vadd.f32 %v28, %v196
    %202 = vst [vmem:[#allocation2] sm:$0xff] %v201
    // Predicated region
    $region18: #{l0_linear_forward.1} parent=1 // pred_check
      _
    $region19: #{l0_linear_forward.1} parent=1 // pred_check_branch
      %204 = sbr.rel (0) target = $region21
    $region20: #{l0_linear_forward.1} parent=1 // pred_region
      %s206 = ssub.s32 128, 128
      %207 = vsyncadd [#allocation3], %s206
      %s209 = sshll.u32 [#allocation2], 4
      %s210 = int_to_ptr.vmem [resolvable:$true] %s209
      %212 = dma.vmem_to_hbm [thread:$0]  %s210, 128, %s3, [#allocation3]
    $region21: #{l0_linear_forward.1} parent=1 // pred_fallthru
      _
    // Predicated region
    $region22: #{l0_linear_forward.1} parent=1 // pred_check
      _
    $region23: #{l0_linear_forward.1} parent=1 // pred_check_branch
      %214 = sbr.rel (0) target = $region25
    $region24: #{l0_linear_forward.1} parent=1 // pred_region
      %215 = dma.done [#allocation3], 128
    $region25: #{l0_linear_forward.1} parent=1 // pred_fallthru
      _
    %216 = vsyncpa [#allocation3], 1

</llo_original>
